<compile_context>
chip_gen: v7x
topology: tpu7x:2x2x1
jax: 0.10.0
libtpu: 0.0.40
codegen_flags: <defaults>
</compile_context>

<pallas_src>
import jax
import jax.numpy as jnp
from jax.experimental import pallas as pl
from jax.experimental.pallas import tpu as pltpu

EPS = 1e-5
LANE = 128
MAX_TILE_R = 1024                 # rows per tile cap; 3 MiB/tile at D=768 f32
TILE_VMEM_BUDGET = 24 << 20       # budget for the 4 double-buffered in/out tiles
SMALLEST_DEFAULT_SCOPED_VMEM = 16 << 20   # v5e default
SCOPED_VMEM_CAP = 30 << 20                # stay under v7x's 32 MiB scoped default


def layernorm_kernel(x_ref, scale_ref, shift_ref, o_ref):
    # x_ref: (TILE_R, D)   scale_ref/shift_ref: (1, D)   o_ref: (TILE_R, D)
    x = x_ref[...].astype(jnp.float32)
    inv_d = 1.0 / x.shape[-1]
    # One-pass row statistics: the two reductions are independent (XLU pipelines them),
    # and no full-width centered temporary is live across a reduce.
    s1 = jnp.sum(x, axis=-1, keepdims=True)
    s2 = jnp.sum(x * x, axis=-1, keepdims=True)
    mean = s1 * inv_d
    var = jnp.maximum(s2 * inv_d - mean * mean, 0.0)   # biased variance (unbiased=False)
    inv_std = jax.lax.rsqrt(var + EPS)                  # EUP rsqrt
    out = (x - mean) * inv_std * scale_ref[...].astype(jnp.float32) \
        + shift_ref[...].astype(jnp.float32)
    o_ref[...] = out.astype(o_ref.dtype)


def _round_up(x, m):
    return ((x + m - 1) // m) * m


def _pick_tile_r(R, D, itemsize, sublane):
    """Rows per tile: sublane-aligned, VMEM-safe, >=2 grid steps when possible,
    and an exact divisor of R when one exists (unmasked full-block stores)."""
    cap = MAX_TILE_R
    # Keep 2x(in)+2x(out) tile buffers under the VMEM budget (matters for huge D).
    vmem_rows = (TILE_VMEM_BUDGET // (4 * D * itemsize)) // sublane * sublane
    if vmem_rows >= sublane:
        cap = min(cap, vmem_rows)
    # >= 2 grid steps whenever R > sublane, so v7x can shard rows across both TCs.
    cap = min(cap, _round_up(pl.cdiv(R, 2), sublane))
    cap = max(cap, sublane)
    # Prefer a tile that divides R exactly.
    if R % sublane == 0:
        for t in range(cap, sublane - 1, -sublane):
            if R % t == 0:
                return t
    return cap


@jax.jit
def layernorm(x, scale, shift):
    """x: (B, S, D); scale/shift: (D,).  Matches PyTorch LayerNorm(eps=1e-5, biased var)."""
    B, S, D = x.shape
    assert D % LANE == 0, "D must be a multiple of 128 lanes (unmasked axis=-1 reductions)"
    R = B * S
    itemsize = jnp.dtype(x.dtype).itemsize
    sublane = 16 if itemsize == 2 else 8   # bf16 tiles need (16, 128) minimum

    x2d = x.reshape(R, D)
    scale2d = scale.reshape(1, D)
    shift2d = shift.reshape(1, D)

    tile_r = _pick_tile_r(R, D, itemsize, sublane)
    grid = (pl.cdiv(R, tile_r),)

    # Explicit scoped-VMEM limit only when the footprint exceeds the smallest default.
    tile_bytes = tile_r * D * itemsize
    vmem_needed = 4 * tile_bytes + 2 * D * itemsize + (2 << 20)   # tiles + params + headroom
    vmem_limit = min(vmem_needed, SCOPED_VMEM_CAP) if vmem_needed > SMALLEST_DEFAULT_SCOPED_VMEM else None

    out = pl.pallas_call(
        layernorm_kernel,
        out_shape=jax.ShapeDtypeStruct((R, D), x.dtype),
        grid_spec=pl.GridSpec(
            grid=grid,
            in_specs=[
                pl.BlockSpec((tile_r, D), lambda i: (i, 0)),   # row tile, auto double-buffered
                pl.BlockSpec((1, D), lambda i: (0, 0)),        # scale: VMEM-resident
                pl.BlockSpec((1, D), lambda i: (0, 0)),        # shift: VMEM-resident
            ],
            out_specs=pl.BlockSpec((tile_r, D), lambda i: (i, 0)),
        ),
        compiler_params=pltpu.CompilerParams(
            dimension_semantics=("parallel",),   # rows independent -> both TCs on v7x
            vmem_limit_bytes=vmem_limit,
        ),
    )(x2d, scale2d, shift2d)
    return out.reshape(B, S, D)


def layernorm_ref(x, scale, shift):
    mean = jnp.mean(x, axis=-1, keepdims=True)
    var = jnp.mean((x - mean) ** 2, axis=-1, keepdims=True)
    norm_x = (x - mean) / jnp.sqrt(var + EPS)
    return scale * norm_x + shift


if __name__ == "__main__":
    key = jax.random.PRNGKey(0)
    kx, ks, kb = jax.random.split(key, 3)

    B, S, D = 2, 3, 768
    x = jax.random.uniform(kx, (B, S, D), dtype=jnp.float32)
    # Module initializes scale=ones, shift=zeros; random affine params exercise the full
    # forward math (semantics identical).
    scale = jax.random.normal(ks, (D,), dtype=jnp.float32)
    shift = jax.random.normal(kb, (D,), dtype=jnp.float32)

    out = layernorm(x, scale, shift)
    out = jax.block_until_ready(out)

    ref = layernorm_ref(x, scale, shift)
    assert out.shape == (B, S, D)
    # Tolerance accounts for one-pass vs two-pass f32 variance reduction-order differences.
    assert jnp.allclose(out, ref, atol=1e-4, rtol=1e-4), float(jnp.max(jnp.abs(out - ref)))
    print("KERNEL_OK")
</pallas_src>

<mosaic_0001>
module attributes {stable_mosaic.version = 11 : i64} {
  func.func @layernorm_kernel(%arg0: i32, %arg1: memref<8x768xf32, #tpu.memory_space<vmem>>, %arg2: memref<1x768xf32, #tpu.memory_space<vmem>>, %arg3: memref<1x768xf32, #tpu.memory_space<vmem>>, %arg4: memref<8x768xf32, #tpu.memory_space<vmem>>) attributes {dimension_semantics = [#tpu.dimension_semantics<parallel>], iteration_bounds = array<i64: 1>, scalar_prefetch = 0 : i64, scratch_operands = 0 : i64, tpu.core_type = #tpu.core_type<tc>, window_params = [{transform_indices = @transform_0, window_bounds = array<i64: 8, 768>}, {pipeline_mode = #tpu.pipeline_mode<synchronous>, transform_indices = @transform_1, window_bounds = array<i64: 1, 768>}, {pipeline_mode = #tpu.pipeline_mode<synchronous>, transform_indices = @transform_2, window_bounds = array<i64: 1, 768>}, {transform_indices = @transform_3, window_bounds = array<i64: 8, 768>}]} {
    %c0 = arith.constant 0 : index
    %c0_0 = arith.constant 0 : index
    %0 = vector.load %arg1[%c0, %c0_0] : memref<8x768xf32, #tpu.memory_space<vmem>>, vector<8x768xf32>
    %cst = arith.constant dense<0.000000e+00> : vector<8xf32>
    %1 = vector.multi_reduction <add>, %0, %cst [1] : vector<8x768xf32> to vector<8xf32>
    %2 = vector.shape_cast %1 : vector<8xf32> to vector<8x1xf32>
    %3 = arith.mulf %0, %0 : vector<8x768xf32>
    %cst_1 = arith.constant dense<0.000000e+00> : vector<8xf32>
    %4 = vector.multi_reduction <add>, %3, %cst_1 [1] : vector<8x768xf32> to vector<8xf32>
    %5 = vector.shape_cast %4 : vector<8xf32> to vector<8x1xf32>
    %cst_2 = arith.constant 0.00130208337 : f32
    %6 = vector.broadcast %cst_2 : f32 to vector<8x1xf32>
    %7 = arith.mulf %2, %6 : vector<8x1xf32>
    %cst_3 = arith.constant 0.00130208337 : f32
    %8 = vector.broadcast %cst_3 : f32 to vector<8x1xf32>
    %9 = arith.mulf %5, %8 : vector<8x1xf32>
    %10 = arith.mulf %7, %7 : vector<8x1xf32>
    %11 = arith.subf %9, %10 : vector<8x1xf32>
    %cst_4 = arith.constant 0.000000e+00 : f32
    %12 = vector.broadcast %cst_4 : f32 to vector<8x1xf32>
    %13 = arith.maximumf %11, %12 : vector<8x1xf32>
    %cst_5 = arith.constant 9.99999974E-6 : f32
    %14 = vector.broadcast %cst_5 : f32 to vector<8x1xf32>
    %15 = arith.addf %13, %14 : vector<8x1xf32>
    %16 = math.rsqrt %15 : vector<8x1xf32>
    %17 = vector.broadcast %7 : vector<8x1xf32> to vector<8x768xf32>
    %18 = arith.subf %0, %17 : vector<8x768xf32>
    %19 = vector.broadcast %16 : vector<8x1xf32> to vector<8x768xf32>
    %20 = arith.mulf %18, %19 : vector<8x768xf32>
    %c0_6 = arith.constant 0 : index
    %c0_7 = arith.constant 0 : index
    %21 = vector.load %arg2[%c0_6, %c0_7] : memref<1x768xf32, #tpu.memory_space<vmem>>, vector<1x768xf32>
    %22 = vector.broadcast %21 : vector<1x768xf32> to vector<8x768xf32>
    %23 = arith.mulf %20, %22 : vector<8x768xf32>
    %c0_8 = arith.constant 0 : index
    %c0_9 = arith.constant 0 : index
    %24 = vector.load %arg3[%c0_8, %c0_9] : memref<1x768xf32, #tpu.memory_space<vmem>>, vector<1x768xf32>
    %25 = vector.broadcast %24 : vector<1x768xf32> to vector<8x768xf32>
    %26 = arith.addf %23, %25 : vector<8x768xf32>
    %c0_10 = arith.constant 0 : index
    %c0_11 = arith.constant 0 : index
    %27 = vector.load %arg4[%c0_10, %c0_11] : memref<8x768xf32, #tpu.memory_space<vmem>>, vector<8x768xf32>
    tpu.vector_store %arg4[%c0_10, %c0_11], %26 {strides = array<i32>} : memref<8x768xf32, #tpu.memory_space<vmem>>, vector<8x768xf32>,
    return
  }
  func.func @transform_0(%arg0: i32) -> (i32, i32) {
    %c0_i32 = arith.constant 0 : i32
    %c0_i32_0 = arith.constant 0 : i32
    return %arg0, %c0_i32 : i32, i32
  }
  func.func @transform_1(%arg0: i32) -> (i32, i32) {
    %c0_i32 = arith.constant 0 : i32
    %c0_i32_0 = arith.constant 0 : i32
    %c0_i32_1 = arith.constant 0 : i32
    return %c0_i32, %c0_i32_0 : i32, i32
  }
  func.func @transform_2(%arg0: i32) -> (i32, i32) {
    %c0_i32 = arith.constant 0 : i32
    %c0_i32_0 = arith.constant 0 : i32
    %c0_i32_1 = arith.constant 0 : i32
    return %c0_i32, %c0_i32_0 : i32, i32
  }
  func.func @transform_3(%arg0: i32) -> (i32, i32) {
    %c0_i32 = arith.constant 0 : i32
    %c0_i32_0 = arith.constant 0 : i32
    return %arg0, %c0_i32 : i32, i32
  }
}

</mosaic_0001>

<llo_original>
// kernel: layernorm.1
$region0: #{layernorm.1}
  #allocation0 [shape = 'u32[]', space=smem, size = 0x4, offset = 0x4, fixed_abs, tag = 'smem constant byte address 0x4 - core index']
  #allocation1 [shape = 'u32[144,128]{1,0:T(1,128)}', space=vmem, size = 0x12000, scoped, tag = 'internal scratch']
  %s0 = inlined_call_operand.vmem [shape: f32[6,768], index: 0, kind: input, shape index: {}]
  %s1 = inlined_call_operand.vmem [shape: f32[1,768], index: 1, kind: input, shape index: {}]
  %s2 = inlined_call_operand.vmem [shape: f32[1,768], index: 2, kind: input, shape index: {}]
  %s3 = inlined_call_operand.vmem [shape: f32[6,768], index: 3, kind: output, shape index: {}]
  %s4 = sld [smem:[#allocation0]]
  $region22: #{layernorm.1} parent=0
    _
  %s6 = ssub.s32 1, %s4
  %s7 = scalar_select 0, %s6, %s4
  // Predicated region
  $region2: #{layernorm.1} parent=0 // pred_check
    _
  $region3: #{layernorm.1} parent=0 // pred_check_branch
    %9 = sbr.rel (0) target = $region5
  $region4: #{layernorm.1} parent=0 // pred_region
    _
  $region5: #{layernorm.1} parent=0 // pred_fallthru
    _
  // Predicated region
  $region6: #{layernorm.1} parent=0 // pred_check
    _
  $region7: #{layernorm.1} parent=0 // pred_check_branch
    %11 = sbr.rel (0) target = $region9
  $region8: #{layernorm.1} parent=0 // pred_region
    _
  $region9: #{layernorm.1} parent=0 // pred_fallthru
    _
  // Predicated region
  $region10: #{layernorm.1} parent=0 // pred_check
    _
  $region11: #{layernorm.1} parent=0 // pred_check_branch
    %13 = sbr.rel (0) target = $region13
  $region12: #{layernorm.1} parent=0 // pred_region
    _
  $region13: #{layernorm.1} parent=0 // pred_fallthru
    _
  %v14 = vld [vmem:[%s0] sm:$0xff]
  %v15 = vld [vmem:[%s0 + $0x8] sm:$0xff]
  %v16 = vld [vmem:[%s0 + $0x10] sm:$0xff]
  %v17 = vld [vmem:[%s0 + $0x18] sm:$0xff]
  %v18 = vld [vmem:[%s0 + $0x20] sm:$0xff]
  %v19 = vld [vmem:[%s0 + $0x28] sm:$0xff]
  %v20 = vadd.f32 %v14, %v15
  %v21 = vadd.f32 %v20, %v16
  %v22 = vadd.f32 %v21, %v17
  %v23 = vadd.f32 %v22, %v18
  %v24 = vadd.f32 %v23, %v19
  %25 = vadd.xlane.f32.xlu0 %v24
  %v26 = vpop.xlane.xlu0 %25
  %v27 = vmul.f32 %v14, %v14
  %v28 = vmul.f32 %v15, %v15
  %v29 = vmul.f32 %v16, %v16
  %v30 = vmul.f32 %v17, %v17
  %v31 = vmul.f32 %v18, %v18
  %v32 = vmul.f32 %v19, %v19
  %v33 = vadd.f32 %v27, %v28
  %v34 = vadd.f32 %v33, %v29
  %v35 = vadd.f32 %v34, %v30
  %v36 = vadd.f32 %v35, %v31
  %v37 = vadd.f32 %v36, %v32
  %38 = vadd.xlane.f32.xlu0 %v37
  %v39 = vpop.xlane.xlu0 %38
  %v40 = vmul.f32 %v26, 0.0013020834
  %v41 = vmul.f32 %v39, 0.0013020834
  %v42 = vmul.f32 %v40, %v40
  %v43 = vsub.f32 %v41, %v42
  %v44 = vmax.f32 %v43, 0.0
  %v45 = vadd.f32 %v44, 1e-05
  %v46 = vrsqrt.pop %v45
  %v47 = vsub.f32 %v14, %v40
  %v48 = vsub.f32 %v15, %v40
  %v49 = vsub.f32 %v16, %v40
  %v50 = vsub.f32 %v17, %v40
  %v51 = vsub.f32 %v18, %v40
  %v52 = vsub.f32 %v19, %v40
  %v53 = vmul.f32 %v47, %v46
  %v54 = vmul.f32 %v48, %v46
  %v55 = vmul.f32 %v49, %v46
  %v56 = vmul.f32 %v50, %v46
  %v57 = vmul.f32 %v51, %v46
  %v58 = vmul.f32 %v52, %v46
  %v59 = vld [vmem:[%s1] sm:$0x3f]
  %v61 = vlaneseq
  %v62 = vshrl.u32 %v61, 7
  %v63 = vsub.s32 0, %v62
  %v64 = vrot.slane %v59, %v63
  %v65 = vlaneseq
  %v66 = vshrl.u32 %v65, 7
  %v67 = vsub.s32 1, %v66
  %v68 = vrot.slane %v59, %v67
  %v69 = vlaneseq
  %v70 = vshrl.u32 %v69, 7
  %v71 = vsub.s32 2, %v70
  %v72 = vrot.slane %v59, %v71
  %v73 = vlaneseq
  %v74 = vshrl.u32 %v73, 7
  %v75 = vsub.s32 3, %v74
  %v76 = vrot.slane %v59, %v75
  %v77 = vlaneseq
  %v78 = vshrl.u32 %v77, 7
  %v79 = vsub.s32 4, %v78
  %v80 = vrot.slane %v59, %v79
  %v81 = vlaneseq
  %v82 = vshrl.u32 %v81, 7
  %v83 = vsub.s32 5, %v82
  %v84 = vrot.slane %v59, %v83
  %v91 = vmul.f32 %v53, %v64
  %v92 = vmul.f32 %v54, %v68
  %v93 = vmul.f32 %v55, %v72
  %v94 = vmul.f32 %v56, %v76
  %v95 = vmul.f32 %v57, %v80
  %v96 = vmul.f32 %v58, %v84
  %v97 = vld [vmem:[%s2] sm:$0x3f]
  %v99 = vlaneseq
  %v100 = vshrl.u32 %v99, 7
  %v101 = vsub.s32 0, %v100
  %v102 = vrot.slane %v97, %v101
  %v103 = vlaneseq
  %v104 = vshrl.u32 %v103, 7
  %v105 = vsub.s32 1, %v104
  %v106 = vrot.slane %v97, %v105
  %v107 = vlaneseq
  %v108 = vshrl.u32 %v107, 7
  %v109 = vsub.s32 2, %v108
  %v110 = vrot.slane %v97, %v109
  %v111 = vlaneseq
  %v112 = vshrl.u32 %v111, 7
  %v113 = vsub.s32 3, %v112
  %v114 = vrot.slane %v97, %v113
  %v115 = vlaneseq
  %v116 = vshrl.u32 %v115, 7
  %v117 = vsub.s32 4, %v116
  %v118 = vrot.slane %v97, %v117
  %v119 = vlaneseq
  %v120 = vshrl.u32 %v119, 7
  %v121 = vsub.s32 5, %v120
  %v122 = vrot.slane %v97, %v121
  %v129 = vadd.f32 %v91, %v102
  %v130 = vadd.f32 %v92, %v106
  %v131 = vadd.f32 %v93, %v110
  %v132 = vadd.f32 %v94, %v114
  %v133 = vadd.f32 %v95, %v118
  %v134 = vadd.f32 %v96, %v122
  %135 = vst [vmem:[%s3] sm:$0xff] %v129
  %136 = vst [vmem:[%s3 + $0x8] sm:$0xff] %v130
  %137 = vst [vmem:[%s3 + $0x10] sm:$0xff] %v131
  %138 = vst [vmem:[%s3 + $0x18] sm:$0xff] %v132
  %139 = vst [vmem:[%s3 + $0x20] sm:$0xff] %v133
  %140 = vst [vmem:[%s3 + $0x28] sm:$0xff] %v134
  // Predicated region
  $region14: #{layernorm.1} parent=0 // pred_check
    _
  $region15: #{layernorm.1} parent=0 // pred_check_branch
    %142 = sbr.rel (0) target = $region17
  $region16: #{layernorm.1} parent=0 // pred_region
    _
  $region17: #{layernorm.1} parent=0 // pred_fallthru
    _
  // Predicated region
  $region18: #{layernorm.1} parent=0 // pred_check
    _
  $region19: #{layernorm.1} parent=0 // pred_check_branch
    %144 = sbr.rel (0) target = $region21
  $region20: #{layernorm.1} parent=0 // pred_region
    _
  $region21: #{layernorm.1} parent=0 // pred_fallthru
    _

</llo_original>
